<compile_context>
chip_gen: v7x
topology: tpu7x:2x2x1
jax: 0.10.0
libtpu: 0.0.40
codegen_flags: <defaults>
</compile_context>

<pallas_src>
import functools

import jax
import jax.numpy as jnp
from jax import lax
from jax.experimental import pallas as pl
from jax.experimental.pallas import tpu as pltpu

EPS = 1e-5  # matches torch.nn.LayerNorm default


def _round_up(x: int, m: int) -> int:
    return ((x + m - 1) // m) * m


def _ln_packed_kernel(x_ref, g_ref, b_ref, m_ref, o_ref, *, inv_c):
    """LayerNorm over channel segments of a (tile_rows, L) packed slab.

    x_ref : (TM, L)  packed tokens; each row holds P tokens of Cp channels.
    g_ref : (1, L)   gamma, tiled P times along lanes (f32, pad lanes = 0).
    b_ref : (1, L)   beta,  tiled P times along lanes (f32, pad lanes = 0).
    m_ref : (L, L)   bf16 0/1 matrix: m[i, j] = 1 iff lane i is a *real*
                     channel of the same token segment as lane j.  x @ m is a
                     segmented sum broadcast across each token's lanes (MXU).
    o_ref : (TM, L)  normalized output, same packing as x.
    inv_c : static python float, 1 / embed_dim.
    """
    f32 = jnp.float32
    bf16 = jnp.bfloat16
    x = x_ref[...].astype(f32)
    m = m_ref[...]

    # --- segmented sum of x (per-token mean), 3-term bf16 split: f32-exact.
    x0 = x.astype(bf16)
    r1 = x - x0.astype(f32)
    x1 = r1.astype(bf16)
    x2 = (r1 - x1.astype(f32)).astype(bf16)
    sum_x = (jnp.dot(x0, m, preferred_element_type=f32)
             + jnp.dot(x1, m, preferred_element_type=f32)
             + jnp.dot(x2, m, preferred_element_type=f32))
    mean = sum_x * inv_c

    xc = x - mean
    sq = xc * xc
    # --- segmented sum of (x - mean)^2, 2-term bf16 split: ~2^-18 relative
    #     variance error -> ~1e-5 absolute on the output (within tolerance),
    #     one fewer MXU pass (keeps v5e on its memory roofline too).
    s0 = sq.astype(bf16)
    s1 = (sq - s0.astype(f32)).astype(bf16)
    sum_sq = (jnp.dot(s0, m, preferred_element_type=f32)
              + jnp.dot(s1, m, preferred_element_type=f32))
    var = sum_sq * inv_c

    inv = lax.rsqrt(var + EPS)                    # EUP slot, effectively free
    o_ref[...] = (xc * inv * g_ref[...] + b_ref[...]).astype(o_ref.dtype)


def patch_embed_forward(x_nchw, gamma, beta, *, tile_rows=4096):
    """PatchEmbed.forward with LayerNorm: (B, C, H, W) -> (B, H*W, C)."""
    B, C, H, W = x_nchw.shape
    N = B * H * W
    dtype = x_nchw.dtype
    itemsize = jnp.dtype(dtype).itemsize
    sub = max(8, 8 * (4 // itemsize))          # sublane multiple: f32 8, bf16 16

    # Channel packing: Cp = next power of two >= C (divides 128) for C <= 128,
    # else next multiple of 128.  Fast path (no channel pad) when Cp == C.
    if C <= 128:
        Cp = 1
        while Cp < C:
            Cp *= 2
        P = 128 // Cp
        L = 128
    else:
        Cp = _round_up(C, 128)
        P = 1
        L = Cp

    # Glue: x.flatten(2).transpose(1, 2)  ==  NCHW -> NHWC -> (N, C).
    # allow_input_fusion below lets XLA fold this permute into the kernel's
    # input DMA instead of materializing it as an extra HBM pass.
    x2d = jnp.transpose(x_nchw, (0, 2, 3, 1)).reshape(N, C)

    pad_c = Cp - C
    N_pad = max(_round_up(N, P), sub * P)       # only pad to packing granularity
    pad_n = N_pad - N
    if pad_c or pad_n:
        x2d = jnp.pad(x2d, ((0, pad_n), (0, pad_c)))   # slow path only
    rows = N_pad // P
    xp = x2d.reshape(rows, L)                   # free row-major reinterpretation

    # Tile size: as large as tile_rows allows, but >= 2 grid steps so the
    # pipeline (and both v7x TensorCores) get work; multiple of the sublane
    # count; ragged last block is masked by Pallas (no tile-multiple padding).
    tm = min(_round_up(tile_rows, sub), _round_up(pl.cdiv(rows, 2), sub))
    tm = max(tm, sub)
    grid = (pl.cdiv(rows, tm),)

    # Lane-aligned affine params and the 0/1 segment matrix (bf16-exact).
    gamma_p = jnp.pad(gamma.astype(jnp.float32), (0, pad_c)) if pad_c else gamma.astype(jnp.float32)
    beta_p = jnp.pad(beta.astype(jnp.float32), (0, pad_c)) if pad_c else beta.astype(jnp.float32)
    g_row = jnp.tile(gamma_p.reshape(1, Cp), (1, P))
    b_row = jnp.tile(beta_p.reshape(1, Cp), (1, P))
    lane = jnp.arange(L, dtype=jnp.int32)
    same_seg = (lane[:, None] // Cp) == (lane[None, :] // Cp)
    real_row = (lane % Cp) < C                   # pad channels excluded from sums
    m_seg = (same_seg & real_row[:, None]).astype(jnp.bfloat16)

    cost = pl.CostEstimate(
        flops=int(5 * 2 * rows * L * L + 22 * rows * L),   # 5 bf16 MXU passes
        transcendentals=int(rows * L),
        bytes_accessed=int(2 * rows * L * itemsize + L * L * 2 + 8 * L),
    )

    kernel = functools.partial(_ln_packed_kernel, inv_c=float(1.0 / C))
    out_p = pl.pallas_call(
        kernel,
        out_shape=jax.ShapeDtypeStruct((rows, L), dtype),
        grid_spec=pltpu.PrefetchScalarGridSpec(
            num_scalar_prefetch=0,
            grid=grid,
            in_specs=[
                pl.BlockSpec((tm, L), lambda i: (i, 0)),   # packed tokens
                pl.BlockSpec((1, L), lambda i: (0, 0)),    # gamma (resident)
                pl.BlockSpec((1, L), lambda i: (0, 0)),    # beta  (resident)
                pl.BlockSpec((L, L), lambda i: (0, 0)),    # segment matrix
            ],
            out_specs=pl.BlockSpec((tm, L), lambda i: (i, 0)),
        ),
        compiler_params=pltpu.CompilerParams(
            dimension_semantics=("parallel",),
            vmem_limit_bytes=48 * 1024 * 1024,
            allow_input_fusion=[True, False, False, False],
        ),
        cost_estimate=cost,
    )(xp, g_row, b_row, m_seg)

    out2d = out_p.reshape(N_pad, Cp)
    if pad_n or pad_c:
        out2d = out2d[:N, :C]                    # slow path only
    return out2d.reshape(B, H * W, C)


def patch_embed_reference(x_nchw, gamma, beta):
    B, C, H, W = x_nchw.shape
    x = jnp.transpose(x_nchw.reshape(B, C, H * W), (0, 2, 1)).astype(jnp.float32)
    mean = jnp.mean(x, axis=-1, keepdims=True)
    var = jnp.mean((x - mean) ** 2, axis=-1, keepdims=True)
    y = (x - mean) * lax.rsqrt(var + EPS) * gamma.astype(jnp.float32) + beta.astype(jnp.float32)
    return y.astype(x_nchw.dtype)


if __name__ == "__main__":
    # Small shapes consistent with the module: embed_dim channels on dim 1.
    B, embed_dim, H, W = 2, 32, 16, 16

    key = jax.random.PRNGKey(0)
    kx, kg, kb = jax.random.split(key, 3)
    x = jax.random.normal(kx, (B, embed_dim, H, W), dtype=jnp.float32)

    # Non-trivial LayerNorm affine so the packed gamma/beta path is exercised.
    gamma = 1.0 + 0.1 * jax.random.normal(kg, (embed_dim,), dtype=jnp.float32)
    beta = 0.1 * jax.random.normal(kb, (embed_dim,), dtype=jnp.float32)

    fwd = jax.jit(patch_embed_forward)           # jit so input fusion can apply
    out = jax.block_until_ready(fwd(x, gamma, beta))

    ref = patch_embed_reference(x, gamma, beta)
    assert out.shape == (B, H * W, embed_dim)
    err = float(jnp.max(jnp.abs(out.astype(jnp.float32) - ref.astype(jnp.float32))))
    assert jnp.allclose(out, ref, atol=2e-5, rtol=2e-5), f"max abs err {err}"

    print("KERNEL_OK")
</pallas_src>

<mosaic_0001>
module attributes {stable_mosaic.version = 11 : i64} {
  func.func @_ln_packed_kernel(%arg0: i32, %arg1: memref<64x128xf32, #tpu.memory_space<vmem>>, %arg2: memref<1x128xf32, #tpu.memory_space<vmem>>, %arg3: memref<1x128xf32, #tpu.memory_space<vmem>>, %arg4: memref<128x128xbf16, #tpu.memory_space<vmem>>, %arg5: memref<64x128xf32, #tpu.memory_space<vmem>>) attributes {dimension_semantics = [#tpu.dimension_semantics<parallel>], iteration_bounds = array<i64: 2>, scalar_prefetch = 0 : i64, scratch_operands = 0 : i64, tpu.core_type = #tpu.core_type<tc>, window_params = [{transform_indices = @transform_0, window_bounds = array<i64: 64, 128>}, {pipeline_mode = #tpu.pipeline_mode<synchronous>, transform_indices = @transform_1, window_bounds = array<i64: 1, 128>}, {pipeline_mode = #tpu.pipeline_mode<synchronous>, transform_indices = @transform_2, window_bounds = array<i64: 1, 128>}, {pipeline_mode = #tpu.pipeline_mode<synchronous>, transform_indices = @transform_3, window_bounds = array<i64: 128, 128>}, {transform_indices = @transform_4, window_bounds = array<i64: 64, 128>}]} {
    %c0 = arith.constant 0 : index
    %c0_0 = arith.constant 0 : index
    %0 = vector.load %arg1[%c0, %c0_0] : memref<64x128xf32, #tpu.memory_space<vmem>>, vector<64x128xf32>
    %c0_1 = arith.constant 0 : index
    %c0_2 = arith.constant 0 : index
    %1 = vector.load %arg4[%c0_1, %c0_2] : memref<128x128xbf16, #tpu.memory_space<vmem>>, vector<128x128xbf16>
    %2 = arith.truncf %0 : vector<64x128xf32> to vector<64x128xbf16>
    %3 = arith.extf %2 : vector<64x128xbf16> to vector<64x128xf32>
    %4 = arith.subf %0, %3 : vector<64x128xf32>
    %5 = arith.truncf %4 : vector<64x128xf32> to vector<64x128xbf16>
    %6 = arith.extf %5 : vector<64x128xbf16> to vector<64x128xf32>
    %7 = arith.subf %4, %6 : vector<64x128xf32>
    %8 = arith.truncf %7 : vector<64x128xf32> to vector<64x128xbf16>
    %cst = arith.constant dense<0.000000e+00> : vector<64x128xf32>
    %9 = tpu.matmul %2, %1, %cst {dimension_numbers = #tpu.dot_dimension_numbers<[1], [0], [0], [1], [0, 0, 1, 1], [], []>} : vector<64x128xbf16>, vector<128x128xbf16>, vector<64x128xf32> -> vector<64x128xf32>
    %cst_3 = arith.constant dense<0.000000e+00> : vector<64x128xf32>
    %10 = tpu.matmul %5, %1, %cst_3 {dimension_numbers = #tpu.dot_dimension_numbers<[1], [0], [0], [1], [0, 0, 1, 1], [], []>} : vector<64x128xbf16>, vector<128x128xbf16>, vector<64x128xf32> -> vector<64x128xf32>
    %11 = arith.addf %9, %10 : vector<64x128xf32>
    %cst_4 = arith.constant dense<0.000000e+00> : vector<64x128xf32>
    %12 = tpu.matmul %8, %1, %cst_4 {dimension_numbers = #tpu.dot_dimension_numbers<[1], [0], [0], [1], [0, 0, 1, 1], [], []>} : vector<64x128xbf16>, vector<128x128xbf16>, vector<64x128xf32> -> vector<64x128xf32>
    %13 = arith.addf %11, %12 : vector<64x128xf32>
    %cst_5 = arith.constant 3.125000e-02 : f32
    %14 = vector.broadcast %cst_5 : f32 to vector<64x128xf32>
    %15 = arith.mulf %13, %14 : vector<64x128xf32>
    %16 = arith.subf %0, %15 : vector<64x128xf32>
    %17 = arith.mulf %16, %16 : vector<64x128xf32>
    %18 = arith.truncf %17 : vector<64x128xf32> to vector<64x128xbf16>
    %19 = arith.extf %18 : vector<64x128xbf16> to vector<64x128xf32>
    %20 = arith.subf %17, %19 : vector<64x128xf32>
    %21 = arith.truncf %20 : vector<64x128xf32> to vector<64x128xbf16>
    %cst_6 = arith.constant dense<0.000000e+00> : vector<64x128xf32>
    %22 = tpu.matmul %18, %1, %cst_6 {dimension_numbers = #tpu.dot_dimension_numbers<[1], [0], [0], [1], [0, 0, 1, 1], [], []>} : vector<64x128xbf16>, vector<128x128xbf16>, vector<64x128xf32> -> vector<64x128xf32>
    %cst_7 = arith.constant dense<0.000000e+00> : vector<64x128xf32>
    %23 = tpu.matmul %21, %1, %cst_7 {dimension_numbers = #tpu.dot_dimension_numbers<[1], [0], [0], [1], [0, 0, 1, 1], [], []>} : vector<64x128xbf16>, vector<128x128xbf16>, vector<64x128xf32> -> vector<64x128xf32>
    %24 = arith.addf %22, %23 : vector<64x128xf32>
    %cst_8 = arith.constant 3.125000e-02 : f32
    %25 = vector.broadcast %cst_8 : f32 to vector<64x128xf32>
    %26 = arith.mulf %24, %25 : vector<64x128xf32>
    %cst_9 = arith.constant 9.99999974E-6 : f32
    %27 = vector.broadcast %cst_9 : f32 to vector<64x128xf32>
    %28 = arith.addf %26, %27 : vector<64x128xf32>
    %29 = math.rsqrt %28 : vector<64x128xf32>
    %30 = arith.mulf %16, %29 : vector<64x128xf32>
    %c0_10 = arith.constant 0 : index
    %c0_11 = arith.constant 0 : index
    %31 = vector.load %arg2[%c0_10, %c0_11] : memref<1x128xf32, #tpu.memory_space<vmem>>, vector<1x128xf32>
    %32 = vector.broadcast %31 : vector<1x128xf32> to vector<64x128xf32>
    %33 = arith.mulf %30, %32 : vector<64x128xf32>
    %c0_12 = arith.constant 0 : index
    %c0_13 = arith.constant 0 : index
    %34 = vector.load %arg3[%c0_12, %c0_13] : memref<1x128xf32, #tpu.memory_space<vmem>>, vector<1x128xf32>
    %35 = vector.broadcast %34 : vector<1x128xf32> to vector<64x128xf32>
    %36 = arith.addf %33, %35 : vector<64x128xf32>
    %c0_14 = arith.constant 0 : index
    %c0_15 = arith.constant 0 : index
    %37 = vector.load %arg5[%c0_14, %c0_15] : memref<64x128xf32, #tpu.memory_space<vmem>>, vector<64x128xf32>
    tpu.vector_store %arg5[%c0_14, %c0_15], %36 {strides = array<i32>} : memref<64x128xf32, #tpu.memory_space<vmem>>, vector<64x128xf32>,
    return
  }
  func.func @transform_0(%arg0: i32) -> (i32, i32) {
    %c0_i32 = arith.constant 0 : i32
    %c0_i32_0 = arith.constant 0 : i32
    return %arg0, %c0_i32 : i32, i32
  }
  func.func @transform_1(%arg0: i32) -> (i32, i32) {
    %c0_i32 = arith.constant 0 : i32
    %c0_i32_0 = arith.constant 0 : i32
    %c0_i32_1 = arith.constant 0 : i32
    return %c0_i32, %c0_i32_0 : i32, i32
  }
  func.func @transform_2(%arg0: i32) -> (i32, i32) {
    %c0_i32 = arith.constant 0 : i32
    %c0_i32_0 = arith.constant 0 : i32
    %c0_i32_1 = arith.constant 0 : i32
    return %c0_i32, %c0_i32_0 : i32, i32
  }
  func.func @transform_3(%arg0: i32) -> (i32, i32) {
    %c0_i32 = arith.constant 0 : i32
    %c0_i32_0 = arith.constant 0 : i32
    %c0_i32_1 = arith.constant 0 : i32
    return %c0_i32, %c0_i32_0 : i32, i32
  }
  func.func @transform_4(%arg0: i32) -> (i32, i32) {
    %c0_i32 = arith.constant 0 : i32
    %c0_i32_0 = arith.constant 0 : i32
    return %arg0, %c0_i32 : i32, i32
  }
}

</mosaic_0001>

<llo_original>
// kernel: patch_embed_forward.1
$region0: #{patch_embed_forward.1}
  #allocation0 [shape = 'u32[]', space=smem, size = 0x4, offset = 0x4, fixed_abs, tag = 'smem constant byte address 0x4 - core index']
  #allocation1 [shape = 'u32[144,128]{1,0:T(1,128)}', space=vmem, size = 0x12000, scoped, tag = 'internal scratch']
  %s0 = inlined_call_operand.vmem [shape: f32[128,128], index: 0, kind: input, shape index: {}]
  %s1 = inlined_call_operand.vmem [shape: f32[1,128], index: 1, kind: input, shape index: {}]
  %s2 = inlined_call_operand.vmem [shape: f32[1,128], index: 2, kind: input, shape index: {}]
  %s3 = inlined_call_operand.vmem [shape: bf16[128,128], index: 3, kind: input, shape index: {}]
  %s4 = inlined_call_operand.vmem [shape: f32[128,128], index: 4, kind: output, shape index: {}]
  %s5 = sld [smem:[#allocation0]]
  $region49: #{patch_embed_forward.1} parent=0
    _
  %s7 = ssub.s32 1, %s5
  %s8 = scalar_select 0, %s7, %s5
  loop: start=0, step=1, limit=4
  $region2: #{patch_embed_forward.1} parent=0 // loop_pre_header
    _
  $region3: #{patch_embed_forward.1} parent=0 // loop_header
    %s10 = sphi 0, %s14
    %p11 = scmp.ge.s32.totalorder %s10, 4
    %s20 = sphi 0, %s22
    %s23 = sphi 0, %s20
    %s24 = sphi 0, %s23
    %s40 = sphi 0, %s24
    %s44 = sphi 0, %s44
    %s46 = sphi 0, %s44
    %s47 = sphi 0, %s46
    %s61 = sphi 0, %s47
    %s65 = sphi 0, %s65
    %s67 = sphi 0, %s65
    %s68 = sphi 0, %s67
    %s82 = sphi 0, %s68
    %s86 = sphi 0, %s86
    %s88 = sphi 0, %s86
    %s89 = sphi 0, %s88
    %s103 = sphi 0, %s89
    %s109 = sphi 0, %s111
    %s112 = sphi 0, %s109
    %s113 = sphi 0, %s112
    %s129 = sphi 0, %s113
  $region4: #{patch_embed_forward.1} parent=0 // loop_header_branch
    %13 = sbr.rel (%p11) target = $region8
  $region5: #{patch_embed_forward.1} parent=0 // loop_body
    %s15 = ssub.s32 %s10, 1
    %s16 = ssub.s32 %s10, 2
    %s17 = sadd.s32 %s10, 1
    %s18 = ssub.s32 %s10, %s17
    %p19 = scmp.eq.s32.totalorder %s18, 0
    %s21 = sadd.s32 %s20, 1
    %s22 = scalar_select %p19, %s20, %s21
    %p25 = pneg %p19
    %p26 = scmp.eq.s32.totalorder %s10, 1
    %p27 = por %p25, %p26
    %p28 = scmp.ne.s32.totalorder %s20, %s23
    %p29 = scmp.eq.s32.totalorder %s10, 0
    %p30 = por %p28, %p29
    %p31 = scmp.ne.s32.totalorder %s20, %s23
    %p32 = scmp.eq.s32.totalorder %s15, 1
    %p33 = por %p31, %p32
    %p34 = scmp.ne.s32.totalorder %s23, %s24
    %p35 = scmp.eq.s32.totalorder %s15, 0
    %p36 = por %p34, %p35
    %p37 = scmp.ne.s32.totalorder %s23, %s24
    %p38 = scmp.eq.s32.totalorder %s16, 1
    %p39 = por %p37, %p38
    %p41 = scmp.ne.s32.totalorder %s24, %s40
    %p42 = scmp.eq.s32.totalorder %s16, 0
    %p43 = por %p41, %p42
    %s45 = sadd.s32 %s44, 1
    %p48 = scmp.eq.s32.totalorder %s10, 1
    %p49 = scmp.ne.s32.totalorder %s44, %s46
    %p50 = scmp.eq.s32.totalorder %s10, 0
    %p51 = por %p49, %p50
    %p52 = scmp.ne.s32.totalorder %s44, %s46
    %p53 = scmp.eq.s32.totalorder %s15, 1
    %p54 = por %p52, %p53
    %p55 = scmp.ne.s32.totalorder %s46, %s47
    %p56 = scmp.eq.s32.totalorder %s15, 0
    %p57 = por %p55, %p56
    %p58 = scmp.ne.s32.totalorder %s46, %s47
    %p59 = scmp.eq.s32.totalorder %s16, 1
    %p60 = por %p58, %p59
    %p62 = scmp.ne.s32.totalorder %s47, %s61
    %p63 = scmp.eq.s32.totalorder %s16, 0
    %p64 = por %p62, %p63
    %s66 = sadd.s32 %s65, 1
    %p69 = scmp.eq.s32.totalorder %s10, 1
    %p70 = scmp.ne.s32.totalorder %s65, %s67
    %p71 = scmp.eq.s32.totalorder %s10, 0
    %p72 = por %p70, %p71
    %p73 = scmp.ne.s32.totalorder %s65, %s67
    %p74 = scmp.eq.s32.totalorder %s15, 1
    %p75 = por %p73, %p74
    %p76 = scmp.ne.s32.totalorder %s67, %s68
    %p77 = scmp.eq.s32.totalorder %s15, 0
    %p78 = por %p76, %p77
    %p79 = scmp.ne.s32.totalorder %s67, %s68
    %p80 = scmp.eq.s32.totalorder %s16, 1
    %p81 = por %p79, %p80
    %p83 = scmp.ne.s32.totalorder %s68, %s82
    %p84 = scmp.eq.s32.totalorder %s16, 0
    %p85 = por %p83, %p84
    %s87 = sadd.s32 %s86, 1
    %p90 = scmp.eq.s32.totalorder %s10, 1
    %p91 = scmp.ne.s32.totalorder %s86, %s88
    %p92 = scmp.eq.s32.totalorder %s10, 0
    %p93 = por %p91, %p92
    %p94 = scmp.ne.s32.totalorder %s86, %s88
    %p95 = scmp.eq.s32.totalorder %s15, 1
    %p96 = por %p94, %p95
    %p97 = scmp.ne.s32.totalorder %s88, %s89
    %p98 = scmp.eq.s32.totalorder %s15, 0
    %p99 = por %p97, %p98
    %p100 = scmp.ne.s32.totalorder %s88, %s89
    %p101 = scmp.eq.s32.totalorder %s16, 1
    %p102 = por %p100, %p101
    %p104 = scmp.ne.s32.totalorder %s89, %s103
    %p105 = scmp.eq.s32.totalorder %s16, 0
    %p106 = por %p104, %p105
    %s107 = ssub.s32 %s10, %s17
    %p108 = scmp.eq.s32.totalorder %s107, 0
    %s110 = sadd.s32 %s109, 1
    %s111 = scalar_select %p108, %s109, %s110
    %p114 = pneg %p108
    %p115 = scmp.eq.s32.totalorder %s10, 1
    %p116 = por %p114, %p115
    %p117 = scmp.ne.s32.totalorder %s109, %s112
    %p118 = scmp.eq.s32.totalorder %s10, 0
    %p119 = por %p117, %p118
    %p120 = scmp.ne.s32.totalorder %s109, %s112
    %p121 = scmp.eq.s32.totalorder %s15, 1
    %p122 = por %p120, %p121
    %p123 = scmp.ne.s32.totalorder %s112, %s113
    %p124 = scmp.eq.s32.totalorder %s15, 0
    %p125 = por %p123, %p124
    %p126 = scmp.ne.s32.totalorder %s112, %s113
    %p127 = scmp.eq.s32.totalorder %s16, 1
    %p128 = por %p126, %p127
    %p130 = scmp.ne.s32.totalorder %s113, %s129
    %p131 = scmp.eq.s32.totalorder %s16, 0
    %p132 = por %p130, %p131
    %p133 = scmp.le.s32.totalorder 1, %s10
    %p134 = scmp.lt.s32.totalorder %s10, 3
    %p135 = pnand %p133, %p134
    %p136 = pneg %p135
    // Predicated region
    $region9: #{patch_embed_forward.1} parent=5 // pred_check
      _
    $region10: #{patch_embed_forward.1} parent=5 // pred_check_branch
      %138 = sbr.rel (%p135) target = $region12
    $region11: #{patch_embed_forward.1} parent=5 // pred_region
      %s139 = ssub.s32 %s10, 1
      // Predicated region
      $region13: #{patch_embed_forward.1} parent=11 // pred_check
        %p140 = pneg %p57
      $region14: #{patch_embed_forward.1} parent=11 // pred_check_branch
        %142 = sbr.rel (%p140) target = $region16
      $region15: #{patch_embed_forward.1} parent=11 // pred_region
        _
      $region16: #{patch_embed_forward.1} parent=11 // pred_fallthru
        _
      // Predicated region
      $region17: #{patch_embed_forward.1} parent=11 // pred_check
        %p143 = pneg %p78
      $region18: #{patch_embed_forward.1} parent=11 // pred_check_branch
        %145 = sbr.rel (%p143) target = $region20
      $region19: #{patch_embed_forward.1} parent=11 // pred_region
        _
      $region20: #{patch_embed_forward.1} parent=11 // pred_fallthru
        _
      // Predicated region
      $region21: #{patch_embed_forward.1} parent=11 // pred_check
        %p146 = pneg %p99
      $region22: #{patch_embed_forward.1} parent=11 // pred_check_branch
        %148 = sbr.rel (%p146) target = $region24
      $region23: #{patch_embed_forward.1} parent=11 // pred_region
        _
      $region24: #{patch_embed_forward.1} parent=11 // pred_fallthru
        _
    $region12: #{patch_embed_forward.1} parent=5 // pred_fallthru
      _
    %p149 = scmp.lt.s32.totalorder %s10, 2
    // Predicated region
    $region25: #{patch_embed_forward.1} parent=5 // pred_check
      %p150 = pneg %p149
    $region26: #{patch_embed_forward.1} parent=5 // pred_check_branch
      %152 = sbr.rel (%p150) target = $region28
    $region27: #{patch_embed_forward.1} parent=5 // pred_region
      // Predicated region
      $region29: #{patch_embed_forward.1} parent=27 // pred_check
        %p153 = pneg %p30
      $region30: #{patch_embed_forward.1} parent=27 // pred_check_branch
        %155 = sbr.rel (%p153) target = $region32
      $region31: #{patch_embed_forward.1} parent=27 // pred_region
        %s156 = smul.u32 8, %s10
        %p157 = scmp.lt.s32.totalorder %s156, 15
        %s158 = scalar_select %p157, %s156, 15
        %s159 = smul.addr %s158, 8
        %s160 = scalar_lea.vmem %s0, %s159
        %s161 = smul.u32 8, %s10
      $region32: #{patch_embed_forward.1} parent=27 // pred_fallthru
        _
    $region28: #{patch_embed_forward.1} parent=5 // pred_fallthru
      _
    %p162 = scmp.le.s32.totalorder 1, %s10
    %p163 = scmp.lt.s32.totalorder %s10, 3
    %p164 = pnand %p162, %p163
    %p165 = pneg %p164
    // Predicated region
    $region33: #{patch_embed_forward.1} parent=5 // pred_check
      _
    $region34: #{patch_embed_forward.1} parent=5 // pred_check_branch
      %167 = sbr.rel (%p164) target = $region36
    $region35: #{patch_embed_forward.1} parent=5 // pred_region
      %s168 = ssub.s32 %s10, 1
      %s169 = smul.u32 8, %s15
      %p170 = scmp.lt.s32.totalorder %s169, 15
      %s171 = scalar_select %p170, %s169, 15
      %s172 = smul.addr %s171, 8
      %s173 = scalar_lea.vmem %s0, %s172
      %p174 = pneg %p36
      %p175 = pneg %p33
      %p176 = pneg %p57
      %p177 = pneg %p54
      %p178 = pneg %p78
      %p179 = pneg %p75
      %p180 = pneg %p99
      %p181 = pneg %p96
      %p182 = pneg %p125
      %p183 = pneg %p122
      %s184 = smul.u32 8, %s15
      %p185 = scmp.lt.s32.totalorder %s184, 15
      %s186 = scalar_select %p185, %s184, 15
      %s187 = smul.addr %s186, 8
      %s188 = scalar_lea.vmem %s4, %s187
      %s189 = smul.u32 8, %s15
      %p190 = scmp.lt.s32.totalorder %s189, 15
      %s191 = scalar_select %p190, %s189, 15
      %s192 = smul.addr %s191, 8
      %s193 = scalar_lea.vmem %s0, %s192
      %s194 = smul.u32 8, %s15
      %s195 = smul.u32 8, %s15
      %p196 = scmp.lt.s32.totalorder %s195, 15
      %s197 = scalar_select %p196, %s195, 15
      %s198 = smul.addr %s197, 8
      %s199 = scalar_lea.vmem %s4, %s198
      %s200 = smul.u32 8, %s15
      %v202 = vld [vmem:[%s193] sm:$0xff]
      %v203 = vld [vmem:[%s193 + $0x8] sm:$0xff]
      %v204 = vld [vmem:[%s193 + $0x10] sm:$0xff]
      %v205 = vld [vmem:[%s193 + $0x18] sm:$0xff]
      %v206 = vld [vmem:[%s193 + $0x20] sm:$0xff]
      %v207 = vld [vmem:[%s193 + $0x28] sm:$0xff]
      %v208 = vld [vmem:[%s193 + $0x30] sm:$0xff]
      %v209 = vld [vmem:[%s193 + $0x38] sm:$0xff]
      %v210 = vld [vmem:[%s3] sm:$0xf]
      %v211 = vld [vmem:[%s3 + $0x4] sm:$0xf]
      %v212 = vld [vmem:[%s3 + $0x8] sm:$0xf]
      %v213 = vld [vmem:[%s3 + $0xc] sm:$0xf]
      %v214 = vld [vmem:[%s3 + $0x10] sm:$0xf]
      %v215 = vld [vmem:[%s3 + $0x14] sm:$0xf]
      %v216 = vld [vmem:[%s3 + $0x18] sm:$0xf]
      %v217 = vld [vmem:[%s3 + $0x1c] sm:$0xf]
      %v218 = vld [vmem:[%s3 + $0x20] sm:$0xf]
      %v219 = vld [vmem:[%s3 + $0x24] sm:$0xf]
      %v220 = vld [vmem:[%s3 + $0x28] sm:$0xf]
      %v221 = vld [vmem:[%s3 + $0x2c] sm:$0xf]
      %v222 = vld [vmem:[%s3 + $0x30] sm:$0xf]
      %v223 = vld [vmem:[%s3 + $0x34] sm:$0xf]
      %v224 = vld [vmem:[%s3 + $0x38] sm:$0xf]
      %v225 = vld [vmem:[%s3 + $0x3c] sm:$0xf]
      %v226 = vpack.c.bf16 %v203, %v202
      %v227 = vpack.c.bf16 %v205, %v204
      %v228 = vpack.c.bf16 %v207, %v206
      %v229 = vpack.c.bf16 %v209, %v208
      %v230 = vunpack.c.l.bf16 %v226
      %v231 = vunpack.c.h.bf16 %v226
      %v232 = vunpack.c.l.bf16 %v227
      %v233 = vunpack.c.h.bf16 %v227
      %v234 = vunpack.c.l.bf16 %v228
      %v235 = vunpack.c.h.bf16 %v228
      %v236 = vunpack.c.l.bf16 %v229
      %v237 = vunpack.c.h.bf16 %v229
      %v238 = vsub.f32 %v202, %v230
      %v239 = vsub.f32 %v203, %v231
      %v240 = vsub.f32 %v204, %v232
      %v241 = vsub.f32 %v205, %v233
      %v242 = vsub.f32 %v206, %v234
      %v243 = vsub.f32 %v207, %v235
      %v244 = vsub.f32 %v208, %v236
      %v245 = vsub.f32 %v209, %v237
      %v246 = vpack.c.bf16 %v239, %v238
      %v247 = vpack.c.bf16 %v241, %v240
      %v248 = vpack.c.bf16 %v243, %v242
      %v249 = vpack.c.bf16 %v245, %v244
      %v250 = vunpack.c.l.bf16 %v246
      %v251 = vunpack.c.h.bf16 %v246
      %v252 = vunpack.c.l.bf16 %v247
      %v253 = vunpack.c.h.bf16 %v247
      %v254 = vunpack.c.l.bf16 %v248
      %v255 = vunpack.c.h.bf16 %v248
      %v256 = vunpack.c.l.bf16 %v249
      %v257 = vunpack.c.h.bf16 %v249
      %v258 = vsub.f32 %v238, %v250
      %v259 = vsub.f32 %v239, %v251
      %v260 = vsub.f32 %v240, %v252
      %v261 = vsub.f32 %v241, %v253
      %v262 = vsub.f32 %v242, %v254
      %v263 = vsub.f32 %v243, %v255
      %v264 = vsub.f32 %v244, %v256
      %v265 = vsub.f32 %v245, %v257
      %v266 = vpack.c.bf16 %v259, %v258
      %v267 = vpack.c.bf16 %v261, %v260
      %v268 = vpack.c.bf16 %v263, %v262
      %v269 = vpack.c.bf16 %v265, %v264
      %v286 = vunpack.c.l.b16 %v210
      %v287 = vunpack.c.l.b16 %v211
      %v288 = vunpack.c.l.b16 %v212
      %v289 = vunpack.c.l.b16 %v213
      %v290 = vunpack.c.l.b16 %v214
      %v291 = vunpack.c.l.b16 %v215
      %v292 = vunpack.c.l.b16 %v216
      %v293 = vunpack.c.l.b16 %v217
      %v294 = vunpack.c.l.b16 %v218
      %v295 = vunpack.c.l.b16 %v219
      %v296 = vunpack.c.l.b16 %v220
      %v297 = vunpack.c.l.b16 %v221
      %v298 = vunpack.c.l.b16 %v222
      %v299 = vunpack.c.l.b16 %v223
      %v300 = vunpack.c.l.b16 %v224
      %v301 = vunpack.c.l.b16 %v225
      %v302 = vpack.c.b16 %v287, %v286
      %v303 = vpack.c.b16 %v289, %v288
      %v304 = vpack.c.b16 %v291, %v290
      %v305 = vpack.c.b16 %v293, %v292
      %v306 = vpack.c.b16 %v295, %v294
      %v307 = vpack.c.b16 %v297, %v296
      %v308 = vpack.c.b16 %v299, %v298
      %v309 = vpack.c.b16 %v301, %v300
      %318 = vmatprep.subr.bf16.mxu0 0
      %319 = vmatpush1.bf16.msra.mxu0 %v302
      %320 = vmatprep.subr.bf16.mxu0 0
      %321 = vmatpush1.bf16.msra.mxu0 %v303
      %322 = vmatprep.subr.bf16.mxu0 0
      %323 = vmatpush1.bf16.msra.mxu0 %v304
      %324 = vmatprep.subr.bf16.mxu0 0
      %325 = vmatpush1.bf16.msra.mxu0 %v305
      %326 = vmatprep.subr.bf16.mxu0 0
      %327 = vmatpush1.bf16.msra.mxu0 %v306
      %328 = vmatprep.subr.bf16.mxu0 0
      %329 = vmatpush1.bf16.msra.mxu0 %v307
      %330 = vmatprep.subr.bf16.mxu0 0
      %331 = vmatpush1.bf16.msra.mxu0 %v308
      %332 = vmatprep.subr.bf16.mxu0 0
      %333 = vmatpush1.bf16.msra.mxu0 %v309
      %334 = vmatprep.subr.bf16.mxu0 0
      %335 = vmatpush1.bf16.msra.mxu0 0
      %336 = vmatprep.subr.bf16.mxu0 0
      %337 = vmatpush1.bf16.msra.mxu0 0
      %338 = vmatprep.subr.bf16.mxu0 0
      %339 = vmatpush1.bf16.msra.mxu0 0
      %340 = vmatprep.subr.bf16.mxu0 0
      %341 = vmatpush1.bf16.msra.mxu0 0
      %342 = vmatprep.subr.bf16.mxu0 0
      %343 = vmatpush1.bf16.msra.mxu0 0
      %344 = vmatprep.subr.bf16.mxu0 0
      %345 = vmatpush1.bf16.msra.mxu0 0
      %346 = vmatprep.subr.bf16.mxu0 0
      %347 = vmatpush1.bf16.msra.mxu0 0
      %348 = vmatprep.subr.bf16.mxu0 0
      %349 = vmatpush1.bf16.msra.mxu0 0
      %350 = vmatprep.mubr.bf16.mxu0 0
      %351 = vmatmul.mubr.bf16.gmra.mrb[0].mxu0 %v246
      %v352 = vpop.f32.mrb[0].mxu0
      %v353 = vadd.f32 0.0, %v352
      %v354 = vpop.f32.mrb[0].mxu0
      %v355 = vpop.f32.mrb[0].mxu0
      %v356 = vadd.f32 0.0, %v355
      %v357 = vpop.f32.mrb[0].mxu0
      %358 = vmatprep.mubr.bf16.mxu0 0
      %359 = vmatmul.mubr.bf16.gmra.mrb[0].mxu0 %v247
      %v360 = vpop.f32.mrb[0].mxu0
      %v361 = vadd.f32 0.0, %v360
      %v362 = vpop.f32.mrb[0].mxu0
      %v363 = vpop.f32.mrb[0].mxu0
      %v364 = vadd.f32 0.0, %v363
      %v365 = vpop.f32.mrb[0].mxu0
      %366 = vmatprep.mubr.bf16.mxu0 0
      %367 = vmatmul.mubr.bf16.gmra.mrb[0].mxu0 %v248
      %v368 = vpop.f32.mrb[0].mxu0
      %v369 = vadd.f32 0.0, %v368
      %v370 = vpop.f32.mrb[0].mxu0
      %v371 = vpop.f32.mrb[0].mxu0
      %v372 = vadd.f32 0.0, %v371
      %v373 = vpop.f32.mrb[0].mxu0
      %374 = vmatprep.mubr.bf16.mxu0 0
      %375 = vmatmul.mubr.bf16.gmra.mrb[0].mxu0 %v249
      %v376 = vpop.f32.mrb[0].mxu0
      %v377 = vadd.f32 0.0, %v376
      %v378 = vpop.f32.mrb[0].mxu0
      %v379 = vpop.f32.mrb[0].mxu0
      %v380 = vadd.f32 0.0, %v379
      %v381 = vpop.f32.mrb[0].mxu0
      %382 = vdwg.mxu0
      %383 = vmatprep.subr.bf16.mxu0 0
      %384 = vmatpush1.bf16.msra.mxu0 %v302
      %385 = vmatprep.subr.bf16.mxu0 0
      %386 = vmatpush1.bf16.msra.mxu0 %v303
      %387 = vmatprep.subr.bf16.mxu0 0
      %388 = vmatpush1.bf16.msra.mxu0 %v304
      %389 = vmatprep.subr.bf16.mxu0 0
      %390 = vmatpush1.bf16.msra.mxu0 %v305
      %391 = vmatprep.subr.bf16.mxu0 0
      %392 = vmatpush1.bf16.msra.mxu0 %v306
      %393 = vmatprep.subr.bf16.mxu0 0
      %394 = vmatpush1.bf16.msra.mxu0 %v307
      %395 = vmatprep.subr.bf16.mxu0 0
      %396 = vmatpush1.bf16.msra.mxu0 %v308
      %397 = vmatprep.subr.bf16.mxu0 0
      %398 = vmatpush1.bf16.msra.mxu0 %v309
      %399 = vmatprep.subr.bf16.mxu0 0
      %400 = vmatpush1.bf16.msra.mxu0 0
      %401 = vmatprep.subr.bf16.mxu0 0
      %402 = vmatpush1.bf16.msra.mxu0 0
      %403 = vmatprep.subr.bf16.mxu0 0
      %404 = vmatpush1.bf16.msra.mxu0 0
      %405 = vmatprep.subr.bf16.mxu0 0
      %406 = vmatpush1.bf16.msra.mxu0 0
      %407 = vmatprep.subr.bf16.mxu0 0
      %408 = vmatpush1.bf16.msra.mxu0 0
      %409 = vmatprep.subr.bf16.mxu0 0
      %410 = vmatpush1.bf16.msra.mxu0 0
      %411 = vmatprep.subr.bf16.mxu0 0
      %412 = vmatpush1.bf16.msra.mxu0 0
      %413 = vmatprep.subr.bf16.mxu0 0
      %414 = vmatpush1.bf16.msra.mxu0 0
      %415 = vmatprep.mubr.bf16.mxu0 0
      %416 = vmatmul.mubr.bf16.gmra.mrb[0].mxu0 %v226
      %v417 = vpop.f32.mrb[0].mxu0
      %v418 = vadd.f32 %v353, %v417
      %v419 = vpop.f32.mrb[0].mxu0
      %v420 = vpop.f32.mrb[0].mxu0
      %v421 = vadd.f32 %v356, %v420
      %v422 = vpop.f32.mrb[0].mxu0
      %423 = vmatprep.mubr.bf16.mxu0 0
      %424 = vmatmul.mubr.bf16.gmra.mrb[0].mxu0 %v227
      %v425 = vpop.f32.mrb[0].mxu0
      %v426 = vadd.f32 %v361, %v425
      %v427 = vpop.f32.mrb[0].mxu0
      %v428 = vpop.f32.mrb[0].mxu0
      %v429 = vadd.f32 %v364, %v428
      %v430 = vpop.f32.mrb[0].mxu0
      %431 = vmatprep.mubr.bf16.mxu0 0
      %432 = vmatmul.mubr.bf16.gmra.mrb[0].mxu0 %v228
      %v433 = vpop.f32.mrb[0].mxu0
      %v434 = vadd.f32 %v369, %v433
      %v435 = vpop.f32.mrb[0].mxu0
      %v436 = vpop.f32.mrb[0].mxu0
      %v437 = vadd.f32 %v372, %v436
      %v438 = vpop.f32.mrb[0].mxu0
      %439 = vmatprep.mubr.bf16.mxu0 0
      %440 = vmatmul.mubr.bf16.gmra.mrb[0].mxu0 %v229
      %v441 = vpop.f32.mrb[0].mxu0
      %v442 = vadd.f32 %v377, %v441
      %v443 = vpop.f32.mrb[0].mxu0
      %v444 = vpop.f32.mrb[0].mxu0
      %v445 = vadd.f32 %v380, %v444
      %v446 = vpop.f32.mrb[0].mxu0
      %447 = vdwg.mxu0
      %448 = vmatprep.subr.bf16.mxu0 0
      %449 = vmatpush1.bf16.msra.mxu0 %v302
      %450 = vmatprep.subr.bf16.mxu0 0
      %451 = vmatpush1.bf16.msra.mxu0 %v303
      %452 = vmatprep.subr.bf16.mxu0 0
      %453 = vmatpush1.bf16.msra.mxu0 %v304
      %454 = vmatprep.subr.bf16.mxu0 0
      %455 = vmatpush1.bf16.msra.mxu0 %v305
      %456 = vmatprep.subr.bf16.mxu0 0
      %457 = vmatpush1.bf16.msra.mxu0 %v306
      %458 = vmatprep.subr.bf16.mxu0 0
      %459 = vmatpush1.bf16.msra.mxu0 %v307
      %460 = vmatprep.subr.bf16.mxu0 0
      %461 = vmatpush1.bf16.msra.mxu0 %v308
      %462 = vmatprep.subr.bf16.mxu0 0
      %463 = vmatpush1.bf16.msra.mxu0 %v309
      %464 = vmatprep.subr.bf16.mxu0 0
      %465 = vmatpush1.bf16.msra.mxu0 0
      %466 = vmatprep.subr.bf16.mxu0 0
      %467 = vmatpush1.bf16.msra.mxu0 0
      %468 = vmatprep.subr.bf16.mxu0 0
      %469 = vmatpush1.bf16.msra.mxu0 0
      %470 = vmatprep.subr.bf16.mxu0 0
      %471 = vmatpush1.bf16.msra.mxu0 0
      %472 = vmatprep.subr.bf16.mxu0 0
      %473 = vmatpush1.bf16.msra.mxu0 0
      %474 = vmatprep.subr.bf16.mxu0 0
      %475 = vmatpush1.bf16.msra.mxu0 0
      %476 = vmatprep.subr.bf16.mxu0 0
      %477 = vmatpush1.bf16.msra.mxu0 0
      %478 = vmatprep.subr.bf16.mxu0 0
      %479 = vmatpush1.bf16.msra.mxu0 0
      %480 = vmatprep.mubr.bf16.mxu0 0
      %481 = vmatmul.mubr.bf16.gmra.mrb[0].mxu0 %v266
      %v482 = vpop.f32.mrb[0].mxu0
      %v483 = vadd.f32 0.0, %v482
      %v484 = vpop.f32.mrb[0].mxu0
      %v485 = vpop.f32.mrb[0].mxu0
      %v486 = vadd.f32 0.0, %v485
      %v487 = vpop.f32.mrb[0].mxu0
      %488 = vmatprep.mubr.bf16.mxu0 0
      %489 = vmatmul.mubr.bf16.gmra.mrb[0].mxu0 %v267
      %v490 = vpop.f32.mrb[0].mxu0
      %v491 = vadd.f32 0.0, %v490
      %v492 = vpop.f32.mrb[0].mxu0
      %v493 = vpop.f32.mrb[0].mxu0
      %v494 = vadd.f32 0.0, %v493
      %v495 = vpop.f32.mrb[0].mxu0
      %496 = vmatprep.mubr.bf16.mxu0 0
      %497 = vmatmul.mubr.bf16.gmra.mrb[0].mxu0 %v268
      %v498 = vpop.f32.mrb[0].mxu0
      %v499 = vadd.f32 0.0, %v498
      %v500 = vpop.f32.mrb[0].mxu0
      %v501 = vpop.f32.mrb[0].mxu0
      %v502 = vadd.f32 0.0, %v501
      %v503 = vpop.f32.mrb[0].mxu0
      %504 = vmatprep.mubr.bf16.mxu0 0
      %505 = vmatmul.mubr.bf16.gmra.mrb[0].mxu0 %v269
      %v506 = vpop.f32.mrb[0].mxu0
      %v507 = vadd.f32 0.0, %v506
      %v508 = vpop.f32.mrb[0].mxu0
      %v509 = vpop.f32.mrb[0].mxu0
      %v510 = vadd.f32 0.0, %v509
      %v511 = vpop.f32.mrb[0].mxu0
      %512 = vdwg.mxu0
      %v513 = vadd.f32 %v418, %v483
      %v514 = vadd.f32 %v421, %v486
      %v515 = vadd.f32 %v426, %v491
      %v516 = vadd.f32 %v429, %v494
      %v517 = vadd.f32 %v434, %v499
      %v518 = vadd.f32 %v437, %v502
      %v519 = vadd.f32 %v442, %v507
      %v520 = vadd.f32 %v445, %v510
      %v521 = vmul.f32 %v513, 0.03125
      %v522 = vmul.f32 %v514, 0.03125
      %v523 = vmul.f32 %v515, 0.03125
      %v524 = vmul.f32 %v516, 0.03125
      %v525 = vmul.f32 %v517, 0.03125
      %v526 = vmul.f32 %v518, 0.03125
      %v527 = vmul.f32 %v519, 0.03125
      %v528 = vmul.f32 %v520, 0.03125
      %v529 = vsub.f32 %v202, %v521
      %v530 = vsub.f32 %v203, %v522
      %v531 = vsub.f32 %v204, %v523
      %v532 = vsub.f32 %v205, %v524
      %v533 = vsub.f32 %v206, %v525
      %v534 = vsub.f32 %v207, %v526
      %v535 = vsub.f32 %v208, %v527
      %v536 = vsub.f32 %v209, %v528
      %v537 = vmul.f32 %v529, %v529
      %v538 = vmul.f32 %v530, %v530
      %v539 = vmul.f32 %v531, %v531
      %v540 = vmul.f32 %v532, %v532
      %v541 = vmul.f32 %v533, %v533
      %v542 = vmul.f32 %v534, %v534
      %v543 = vmul.f32 %v535, %v535
      %v544 = vmul.f32 %v536, %v536
      %v545 = vpack.c.bf16 %v538, %v537
      %v546 = vpack.c.bf16 %v540, %v539
      %v547 = vpack.c.bf16 %v542, %v541
      %v548 = vpack.c.bf16 %v544, %v543
      %v549 = vunpack.c.l.bf16 %v545
      %v550 = vunpack.c.h.bf16 %v545
      %v551 = vunpack.c.l.bf16 %v546
      %v552 = vunpack.c.h.bf16 %v546
      %v553 = vunpack.c.l.bf16 %v547
      %v554 = vunpack.c.h.bf16 %v547
      %v555 = vunpack.c.l.bf16 %v548
      %v556 = vunpack.c.h.bf16 %v548
      %v557 = vsub.f32 %v537, %v549
      %v558 = vsub.f32 %v538, %v550
      %v559 = vsub.f32 %v539, %v551
      %v560 = vsub.f32 %v540, %v552
      %v561 = vsub.f32 %v541, %v553
      %v562 = vsub.f32 %v542, %v554
      %v563 = vsub.f32 %v543, %v555
      %v564 = vsub.f32 %v544, %v556
      %v565 = vpack.c.bf16 %v558, %v557
      %v566 = vpack.c.bf16 %v560, %v559
      %v567 = vpack.c.bf16 %v562, %v561
      %v568 = vpack.c.bf16 %v564, %v563
      %569 = vmatprep.subr.bf16.mxu0 0
      %570 = vmatpush1.bf16.msra.mxu0 %v302
      %571 = vmatprep.subr.bf16.mxu0 0
      %572 = vmatpush1.bf16.msra.mxu0 %v303
      %573 = vmatprep.subr.bf16.mxu0 0
      %574 = vmatpush1.bf16.msra.mxu0 %v304
      %575 = vmatprep.subr.bf16.mxu0 0
      %576 = vmatpush1.bf16.msra.mxu0 %v305
      %577 = vmatprep.subr.bf16.mxu0 0
      %578 = vmatpush1.bf16.msra.mxu0 %v306
      %579 = vmatprep.subr.bf16.mxu0 0
      %580 = vmatpush1.bf16.msra.mxu0 %v307
      %581 = vmatprep.subr.bf16.mxu0 0
      %582 = vmatpush1.bf16.msra.mxu0 %v308
      %583 = vmatprep.subr.bf16.mxu0 0
      %584 = vmatpush1.bf16.msra.mxu0 %v309
      %585 = vmatprep.subr.bf16.mxu0 0
      %586 = vmatpush1.bf16.msra.mxu0 0
      %587 = vmatprep.subr.bf16.mxu0 0
      %588 = vmatpush1.bf16.msra.mxu0 0
      %589 = vmatprep.subr.bf16.mxu0 0
      %590 = vmatpush1.bf16.msra.mxu0 0
      %591 = vmatprep.subr.bf16.mxu0 0
      %592 = vmatpush1.bf16.msra.mxu0 0
      %593 = vmatprep.subr.bf16.mxu0 0
      %594 = vmatpush1.bf16.msra.mxu0 0
      %595 = vmatprep.subr.bf16.mxu0 0
      %596 = vmatpush1.bf16.msra.mxu0 0
      %597 = vmatprep.subr.bf16.mxu0 0
      %598 = vmatpush1.bf16.msra.mxu0 0
      %599 = vmatprep.subr.bf16.mxu0 0
      %600 = vmatpush1.bf16.msra.mxu0 0
      %601 = vmatprep.mubr.bf16.mxu0 0
      %602 = vmatmul.mubr.bf16.gmra.mrb[0].mxu0 %v565
      %v603 = vpop.f32.mrb[0].mxu0
      %v604 = vadd.f32 0.0, %v603
      %v605 = vpop.f32.mrb[0].mxu0
      %v606 = vpop.f32.mrb[0].mxu0
      %v607 = vadd.f32 0.0, %v606
      %v608 = vpop.f32.mrb[0].mxu0
      %609 = vmatprep.mubr.bf16.mxu0 0
      %610 = vmatmul.mubr.bf16.gmra.mrb[0].mxu0 %v566
      %v611 = vpop.f32.mrb[0].mxu0
      %v612 = vadd.f32 0.0, %v611
      %v613 = vpop.f32.mrb[0].mxu0
      %v614 = vpop.f32.mrb[0].mxu0
      %v615 = vadd.f32 0.0, %v614
      %v616 = vpop.f32.mrb[0].mxu0
      %617 = vmatprep.mubr.bf16.mxu0 0
      %618 = vmatmul.mubr.bf16.gmra.mrb[0].mxu0 %v567
      %v619 = vpop.f32.mrb[0].mxu0
      %v620 = vadd.f32 0.0, %v619
      %v621 = vpop.f32.mrb[0].mxu0
      %v622 = vpop.f32.mrb[0].mxu0
      %v623 = vadd.f32 0.0, %v622
      %v624 = vpop.f32.mrb[0].mxu0
      %625 = vmatprep.mubr.bf16.mxu0 0
      %626 = vmatmul.mubr.bf16.gmra.mrb[0].mxu0 %v568
      %v627 = vpop.f32.mrb[0].mxu0
      %v628 = vadd.f32 0.0, %v627
      %v629 = vpop.f32.mrb[0].mxu0
      %v630 = vpop.f32.mrb[0].mxu0
      %v631 = vadd.f32 0.0, %v630
      %v632 = vpop.f32.mrb[0].mxu0
      %633 = vdwg.mxu0
      %634 = vmatprep.subr.bf16.mxu0 0
      %635 = vmatpush1.bf16.msra.mxu0 %v302
      %636 = vmatprep.subr.bf16.mxu0 0
      %637 = vmatpush1.bf16.msra.mxu0 %v303
      %638 = vmatprep.subr.bf16.mxu0 0
      %639 = vmatpush1.bf16.msra.mxu0 %v304
      %640 = vmatprep.subr.bf16.mxu0 0
      %641 = vmatpush1.bf16.msra.mxu0 %v305
      %642 = vmatprep.subr.bf16.mxu0 0
      %643 = vmatpush1.bf16.msra.mxu0 %v306
      %644 = vmatprep.subr.bf16.mxu0 0
      %645 = vmatpush1.bf16.msra.mxu0 %v307
      %646 = vmatprep.subr.bf16.mxu0 0
      %647 = vmatpush1.bf16.msra.mxu0 %v308
      %648 = vmatprep.subr.bf16.mxu0 0
      %649 = vmatpush1.bf16.msra.mxu0 %v309
      %650 = vmatprep.subr.bf16.mxu0 0
      %651 = vmatpush1.bf16.msra.mxu0 0
      %652 = vmatprep.subr.bf16.mxu0 0
      %653 = vmatpush1.bf16.msra.mxu0 0
      %654 = vmatprep.subr.bf16.mxu0 0
      %655 = vmatpush1.bf16.msra.mxu0 0
      %656 = vmatprep.subr.bf16.mxu0 0
      %657 = vmatpush1.bf16.msra.mxu0 0
      %658 = vmatprep.subr.bf16.mxu0 0
      %659 = vmatpush1.bf16.msra.mxu0 0
      %660 = vmatprep.subr.bf16.mxu0 0
      %661 = vmatpush1.bf16.msra.mxu0 0
      %662 = vmatprep.subr.bf16.mxu0 0
      %663 = vmatpush1.bf16.msra.mxu0 0
      %664 = vmatprep.subr.bf16.mxu0 0
      %665 = vmatpush1.bf16.msra.mxu0 0
      %666 = vmatprep.mubr.bf16.mxu0 0
      %667 = vmatmul.mubr.bf16.gmra.mrb[0].mxu0 %v545
      %v668 = vpop.f32.mrb[0].mxu0
      %v669 = vadd.f32 %v604, %v668
      %v670 = vpop.f32.mrb[0].mxu0
      %v671 = vpop.f32.mrb[0].mxu0
      %v672 = vadd.f32 %v607, %v671
      %v673 = vpop.f32.mrb[0].mxu0
      %674 = vmatprep.mubr.bf16.mxu0 0
      %675 = vmatmul.mubr.bf16.gmra.mrb[0].mxu0 %v546
      %v676 = vpop.f32.mrb[0].mxu0
      %v677 = vadd.f32 %v612, %v676
      %v678 = vpop.f32.mrb[0].mxu0
      %v679 = vpop.f32.mrb[0].mxu0
      %v680 = vadd.f32 %v615, %v679
      %v681 = vpop.f32.mrb[0].mxu0
      %682 = vmatprep.mubr.bf16.mxu0 0
      %683 = vmatmul.mubr.bf16.gmra.mrb[0].mxu0 %v547
      %v684 = vpop.f32.mrb[0].mxu0
      %v685 = vadd.f32 %v620, %v684
      %v686 = vpop.f32.mrb[0].mxu0
      %v687 = vpop.f32.mrb[0].mxu0
      %v688 = vadd.f32 %v623, %v687
      %v689 = vpop.f32.mrb[0].mxu0
      %690 = vmatprep.mubr.bf16.mxu0 0
      %691 = vmatmul.mubr.bf16.gmra.mrb[0].mxu0 %v548
      %v692 = vpop.f32.mrb[0].mxu0
      %v693 = vadd.f32 %v628, %v692
      %v694 = vpop.f32.mrb[0].mxu0
      %v695 = vpop.f32.mrb[0].mxu0
      %v696 = vadd.f32 %v631, %v695
      %v697 = vpop.f32.mrb[0].mxu0
      %698 = vdwg.mxu0
      %v699 = vmul.f32 %v669, 0.03125
      %v700 = vmul.f32 %v672, 0.03125
      %v701 = vmul.f32 %v677, 0.03125
      %v702 = vmul.f32 %v680, 0.03125
      %v703 = vmul.f32 %v685, 0.03125
      %v704 = vmul.f32 %v688, 0.03125
      %v705 = vmul.f32 %v693, 0.03125
      %v706 = vmul.f32 %v696, 0.03125
      %v707 = vadd.f32 %v699, 1e-05
      %v708 = vadd.f32 %v700, 1e-05
      %v709 = vadd.f32 %v701, 1e-05
      %v710 = vadd.f32 %v702, 1e-05
      %v711 = vadd.f32 %v703, 1e-05
      %v712 = vadd.f32 %v704, 1e-05
      %v713 = vadd.f32 %v705, 1e-05
      %v714 = vadd.f32 %v706, 1e-05
      %v715 = vrsqrt.pop %v707
      %v716 = vrsqrt.pop %v708
      %v717 = vrsqrt.pop %v709
      %v718 = vrsqrt.pop %v710
      %v719 = vrsqrt.pop %v711
      %v720 = vrsqrt.pop %v712
      %v721 = vrsqrt.pop %v713
      %v722 = vrsqrt.pop %v714
      %v723 = vmul.f32 %v529, %v715
      %v724 = vmul.f32 %v530, %v716
      %v725 = vmul.f32 %v531, %v717
      %v726 = vmul.f32 %v532, %v718
      %v727 = vmul.f32 %v533, %v719
      %v728 = vmul.f32 %v534, %v720
      %v729 = vmul.f32 %v535, %v721
      %v730 = vmul.f32 %v536, %v722
      %v731 = vld [vmem:[%s1] sm:$0x1]
      %v733 = vlaneseq
      %v734 = vshrl.u32 %v733, 7
      %v735 = vsub.s32 0, %v734
      %v736 = vrot.slane %v731, %v735
      %v738 = vmul.f32 %v723, %v736
      %v739 = vmul.f32 %v724, %v736
      %v740 = vmul.f32 %v725, %v736
      %v741 = vmul.f32 %v726, %v736
      %v742 = vmul.f32 %v727, %v736
      %v743 = vmul.f32 %v728, %v736
      %v744 = vmul.f32 %v729, %v736
      %v745 = vmul.f32 %v730, %v736
      %v746 = vld [vmem:[%s2] sm:$0x1]
      %v748 = vlaneseq
      %v749 = vshrl.u32 %v748, 7
      %v750 = vsub.s32 0, %v749
      %v751 = vrot.slane %v746, %v750
      %v753 = vadd.f32 %v738, %v751
      %v754 = vadd.f32 %v739, %v751
      %v755 = vadd.f32 %v740, %v751
      %v756 = vadd.f32 %v741, %v751
      %v757 = vadd.f32 %v742, %v751
      %v758 = vadd.f32 %v743, %v751
      %v759 = vadd.f32 %v744, %v751
      %v760 = vadd.f32 %v745, %v751
      %761 = vst [vmem:[%s199] sm:$0xff] %v753
      %762 = vst [vmem:[%s199 + $0x8] sm:$0xff] %v754
      %763 = vst [vmem:[%s199 + $0x10] sm:$0xff] %v755
      %764 = vst [vmem:[%s199 + $0x18] sm:$0xff] %v756
      %765 = vst [vmem:[%s199 + $0x20] sm:$0xff] %v757
      %766 = vst [vmem:[%s199 + $0x28] sm:$0xff] %v758
      %767 = vst [vmem:[%s199 + $0x30] sm:$0xff] %v759
      %768 = vst [vmem:[%s199 + $0x38] sm:$0xff] %v760
      %s769 = smul.u32 8, %s15
      %p770 = scmp.lt.s32.totalorder %s769, 15
      %s771 = scalar_select %p770, %s769, 15
      %s772 = smul.addr %s771, 8
      %s773 = scalar_lea.vmem %s4, %s772
      // Predicated region
      $region37: #{patch_embed_forward.1} parent=35 // pred_check
        %p774 = pneg %p122
      $region38: #{patch_embed_forward.1} parent=35 // pred_check_branch
        %776 = sbr.rel (%p774) target = $region40
      $region39: #{patch_embed_forward.1} parent=35 // pred_region
        %s777 = smul.u32 8, %s15
      $region40: #{patch_embed_forward.1} parent=35 // pred_fallthru
        _
    $region36: #{patch_embed_forward.1} parent=5 // pred_fallthru
      _
    %p778 = scmp.le.s32.totalorder 2, %s10
    // Predicated region
    $region41: #{patch_embed_forward.1} parent=5 // pred_check
      %p779 = pneg %p778
    $region42: #{patch_embed_forward.1} parent=5 // pred_check_branch
      %781 = sbr.rel (%p779) target = $region44
    $region43: #{patch_embed_forward.1} parent=5 // pred_region
      %s782 = ssub.s32 %s10, 2
      // Predicated region
      $region45: #{patch_embed_forward.1} parent=43 // pred_check
        %p783 = pneg %p128
      $region46: #{patch_embed_forward.1} parent=43 // pred_check_branch
        %785 = sbr.rel (%p783) target = $region48
      $region47: #{patch_embed_forward.1} parent=43 // pred_region
        %s786 = smul.u32 8, %s16
        %p787 = scmp.lt.s32.totalorder %s786, 15
        %s788 = scalar_select %p787, %s786, 15
        %s789 = smul.addr %s788, 8
        %s790 = scalar_lea.vmem %s4, %s789
      $region48: #{patch_embed_forward.1} parent=43 // pred_fallthru
        _
    $region44: #{patch_embed_forward.1} parent=5 // pred_fallthru
      _
  $region6: #{patch_embed_forward.1} parent=0 // loop_footer
    %s14 = sadd.s32 1, %s10
  $region7: #{patch_embed_forward.1} parent=0 // loop_footer_branch
    %9 = sbr.rel target = $region3
  $region8: #{patch_embed_forward.1} parent=0 // loop_exit
    _

</llo_original>
